<compile_context>
chip_gen: v5e
topology: v5e:2x2
jax: 0.10.0
libtpu: 0.0.40
codegen_flags: <defaults>
</compile_context>

<pallas_src>
import functools

import jax
import jax.numpy as jnp
from jax import lax
from jax.experimental import pallas as pl
from jax.experimental.pallas import tpu as pltpu


def _round_up(n, m):
    return ((n + m - 1) // m) * m


def _cdiv(a, b):
    return -(-a // b)


def _mlp_kernel(x_ref, w1_ref, b1_ref, w2_ref, b2_ref, w3_ref, b3_ref, o_ref,
                *, out_dim):
    # x_ref is a (tile_b, in_dim) tile in its natural (batch-major) layout.
    # Contract dim 1 of both operands so the small x tile is transposed
    # on-chip and the result is feature-major: h = (h1, tile_b), batch on lanes.
    h = lax.dot_general(
        w1_ref[...], x_ref[...],
        dimension_numbers=(((1,), (1,)), ((), ())),
        preferred_element_type=jnp.float32)
    h = jnp.maximum(h + b1_ref[...], 0.0)          # bias col -> lane broadcast
    # Layer 2: h = relu(W2 @ h + b2)               (MXU + VPU)
    h = jnp.dot(w2_ref[...], h, preferred_element_type=jnp.float32)
    h = jnp.maximum(h + b2_ref[...], 0.0)
    # Layer 3 (Identity output activation)
    if out_dim == 1:
        # VPU multiply (lane-broadcast of the (h2, 1) weight column) + XLU
        # cross-sublane reduce -> lane-dense (1, tile_b) row. b3 is an SMEM
        # scalar, added as a scalar broadcast.
        y = jnp.sum(h * w3_ref[...], axis=0, keepdims=True) + b3_ref[0]
    else:
        # General case: (out_dim, h2) @ (h2, tile_b) -> (out_dim, tile_b)
        y = jnp.dot(w3_ref[...], h, preferred_element_type=jnp.float32)
        y = y + b3_ref[...]
    o_ref[...] = y.astype(o_ref.dtype)


def pre_nn_function_forward(x, params, *, tile_b=None):
    """Pallas implementation of PreNNFunction.forward.

    x: [batch, in_dim] float32 (natural layout; no wrapper transpose/pad)
    params: (w1, b1, w2, b2, w3, b3) with
        w1: [h1, in_dim], b1: [h1, 1]
        w2: [h2, h1],     b2: [h2, 1]
        w3: [h2, out_dim] if out_dim == 1 else [out_dim, h2]
        b3: [out_dim, 1]
    Returns torch.squeeze(mlp(x), -1) semantics.
    """
    w1, b1, w2, b2, w3, b3 = params
    batch, in_dim = x.shape
    h1 = b1.shape[0]
    h2 = b2.shape[0]
    out_dim = b3.shape[0]

    if tile_b is None:
        # Target >= 2 grid steps once the (128-rounded) batch allows it, so the
        # "parallel" axis can use both v7x TensorCores; cap the tile at 8192
        # columns so double-buffered x tiles + f32 temporaries stay small on
        # every generation (well under v5e's VMEM budget with the 32 MiB limit
        # below).
        batch128 = _round_up(batch, 128)
        tile_b = min(_round_up(_cdiv(batch128, 2), 128), 8192)
    assert tile_b % 128 == 0, "tile_b must be a multiple of 128 (lane width)"

    grid = (_cdiv(batch, tile_b),)  # last block may be partial (masked write)

    full = lambda shape: pl.BlockSpec(shape, lambda i: (0, 0))

    in_specs = [
        # x tile in natural [batch, in_dim] layout: one contiguous DMA chunk.
        pl.BlockSpec((tile_b, in_dim), lambda i: (i, 0)),
        full((h1, in_dim)), full((h1, 1)),          # layer 1 (VMEM resident)
        full((h2, h1)),     full((h2, 1)),          # layer 2 (VMEM resident)
        full(w3.shape),                             # layer 3 weight
    ]
    if out_dim == 1:
        b3_arg = b3.reshape(1)                      # scalar bias -> SMEM
        in_specs.append(pl.BlockSpec(memory_space=pltpu.MemorySpace.SMEM))
    else:
        b3_arg = b3
        in_specs.append(full((out_dim, 1)))

    out = pl.pallas_call(
        functools.partial(_mlp_kernel, out_dim=out_dim),
        out_shape=jax.ShapeDtypeStruct((out_dim, batch), x.dtype),
        grid_spec=pltpu.PrefetchScalarGridSpec(
            num_scalar_prefetch=0,
            grid=grid,
            in_specs=in_specs,
            out_specs=pl.BlockSpec((out_dim, tile_b), lambda i: (0, i)),
        ),
        compiler_params=pltpu.CompilerParams(
            dimension_semantics=("parallel",),
            # Headroom over v5e's 16 MiB default; equals the v6e/v7x default.
            vmem_limit_bytes=32 * 1024 * 1024,
        ),
    )(x, w1, b1, w2, b2, w3, b3_arg)

    # torch.squeeze(y_hat, -1): drop the last axis only when it is size 1.
    if out_dim == 1:
        return out[0]        # (batch,)
    return out.T             # (batch, out_dim)


def init_params(key, in_dim, hidden_sizes, out_dim):
    """Deterministic init of mlp([in_dim] + hidden_sizes + [out_dim]).

    Weights stored in torch layout [out_features, in_features]; biases as
    [out_features, 1] columns. The final-layer weight is stored transposed
    ([h_last, 1]) when out_dim == 1 to match the kernel's VPU-reduce path.
    """
    sizes = [in_dim] + list(hidden_sizes) + [out_dim]
    params = []
    for j in range(len(sizes) - 1):
        key, kw, kb = jax.random.split(key, 3)
        fan_in, fan_out = sizes[j], sizes[j + 1]
        bound = 1.0 / (fan_in ** 0.5)
        w = jax.random.uniform(kw, (fan_out, fan_in), jnp.float32, -bound, bound)
        b = jax.random.uniform(kb, (fan_out, 1), jnp.float32, -bound, bound)
        params += [w, b]
    if out_dim == 1:
        params[-2] = params[-2].T  # (1, h_last) -> (h_last, 1)
    return tuple(params)


def reference_forward(x, params):
    w1, b1, w2, b2, w3, b3 = params
    out_dim = b3.shape[0]
    h = jnp.maximum(x @ w1.T + b1.T, 0.0)
    h = jnp.maximum(h @ w2.T + b2.T, 0.0)
    if out_dim == 1:
        y = h @ w3 + b3.T          # w3 stored as (h_last, 1)
        y = jnp.squeeze(y, axis=-1)
    else:
        y = h @ w3.T + b3.T
    return y


if __name__ == "__main__":
    # PreNNFunction(in_dim=16, out_dim, hidden_sizes=(32, 32), activation=nn.ReLU)
    in_dim, hidden_sizes = 16, (32, 32)
    key = jax.random.PRNGKey(0)

    # (batch, out_dim): full tile / partial final block / general multi-output head.
    for batch, out_dim in ((128, 1), (130, 1), (128, 3)):
        key, kx, kp = jax.random.split(key, 3)
        x = jax.random.normal(kx, (batch, in_dim), jnp.float32)
        params = init_params(kp, in_dim, hidden_sizes, out_dim)

        y = jax.jit(pre_nn_function_forward)(x, params)
        jax.block_until_ready(y)

        y_ref = reference_forward(x, params)
        expected_shape = (batch,) if out_dim == 1 else (batch, out_dim)
        assert y.shape == expected_shape, (y.shape, expected_shape)
        assert jnp.allclose(y, y_ref, atol=1e-5, rtol=1e-5), \
            f"mismatch vs reference (batch={batch}, out_dim={out_dim})"

    print("KERNEL_OK")
</pallas_src>

<mosaic_0001>
module attributes {stable_mosaic.version = 11 : i64} {
  func.func @_mlp_kernel(%arg0: i32, %arg1: memref<128x16xf32, #tpu.memory_space<vmem>>, %arg2: memref<32x16xf32, #tpu.memory_space<vmem>>, %arg3: memref<32x1xf32, #tpu.memory_space<vmem>>, %arg4: memref<32x32xf32, #tpu.memory_space<vmem>>, %arg5: memref<32x1xf32, #tpu.memory_space<vmem>>, %arg6: memref<32x1xf32, #tpu.memory_space<vmem>>, %arg7: memref<1xf32, #tpu.memory_space<smem>>, %arg8: memref<1x128xf32, #tpu.memory_space<vmem>>) attributes {dimension_semantics = [#tpu.dimension_semantics<parallel>], iteration_bounds = array<i64: 1>, scalar_prefetch = 0 : i64, scratch_operands = 0 : i64, tpu.core_type = #tpu.core_type<tc>, window_params = [{transform_indices = @transform_0, window_bounds = array<i64: 128, 16>}, {pipeline_mode = #tpu.pipeline_mode<synchronous>, transform_indices = @transform_1, window_bounds = array<i64: 32, 16>}, {pipeline_mode = #tpu.pipeline_mode<synchronous>, transform_indices = @transform_2, window_bounds = array<i64: 32, 1>}, {pipeline_mode = #tpu.pipeline_mode<synchronous>, transform_indices = @transform_3, window_bounds = array<i64: 32, 32>}, {pipeline_mode = #tpu.pipeline_mode<synchronous>, transform_indices = @transform_4, window_bounds = array<i64: 32, 1>}, {pipeline_mode = #tpu.pipeline_mode<synchronous>, transform_indices = @transform_5, window_bounds = array<i64: 32, 1>}, {transform_indices = @transform_6, window_bounds = array<i64: 1>}, {transform_indices = @transform_7, window_bounds = array<i64: 1, 128>}]} {
    %c0 = arith.constant 0 : index
    %c0_0 = arith.constant 0 : index
    %0 = vector.load %arg2[%c0, %c0_0] : memref<32x16xf32, #tpu.memory_space<vmem>>, vector<32x16xf32>
    %c0_1 = arith.constant 0 : index
    %c0_2 = arith.constant 0 : index
    %1 = vector.load %arg1[%c0_1, %c0_2] : memref<128x16xf32, #tpu.memory_space<vmem>>, vector<128x16xf32>
    %cst = arith.constant dense<0.000000e+00> : vector<32x128xf32>
    %2 = tpu.matmul %0, %1, %cst {dimension_numbers = #tpu.dot_dimension_numbers<[1], [1], [0], [0], [0, 0, 1, 0], [], []>} : vector<32x16xf32>, vector<128x16xf32>, vector<32x128xf32> -> vector<32x128xf32>
    %c0_3 = arith.constant 0 : index
    %c0_4 = arith.constant 0 : index
    %3 = vector.load %arg3[%c0_3, %c0_4] : memref<32x1xf32, #tpu.memory_space<vmem>>, vector<32x1xf32>
    %4 = vector.broadcast %3 : vector<32x1xf32> to vector<32x128xf32>
    %5 = arith.addf %2, %4 : vector<32x128xf32>
    %cst_5 = arith.constant 0.000000e+00 : f32
    %6 = vector.broadcast %cst_5 : f32 to vector<32x128xf32>
    %7 = arith.maximumf %5, %6 : vector<32x128xf32>
    %c0_6 = arith.constant 0 : index
    %c0_7 = arith.constant 0 : index
    %8 = vector.load %arg4[%c0_6, %c0_7] : memref<32x32xf32, #tpu.memory_space<vmem>>, vector<32x32xf32>
    %cst_8 = arith.constant dense<0.000000e+00> : vector<32x128xf32>
    %9 = tpu.matmul %8, %7, %cst_8 {dimension_numbers = #tpu.dot_dimension_numbers<[1], [0], [0], [1], [0, 0, 1, 1], [], []>} : vector<32x32xf32>, vector<32x128xf32>, vector<32x128xf32> -> vector<32x128xf32>
    %c0_9 = arith.constant 0 : index
    %c0_10 = arith.constant 0 : index
    %10 = vector.load %arg5[%c0_9, %c0_10] : memref<32x1xf32, #tpu.memory_space<vmem>>, vector<32x1xf32>
    %11 = vector.broadcast %10 : vector<32x1xf32> to vector<32x128xf32>
    %12 = arith.addf %9, %11 : vector<32x128xf32>
    %cst_11 = arith.constant 0.000000e+00 : f32
    %13 = vector.broadcast %cst_11 : f32 to vector<32x128xf32>
    %14 = arith.maximumf %12, %13 : vector<32x128xf32>
    %c0_12 = arith.constant 0 : index
    %c0_13 = arith.constant 0 : index
    %15 = vector.load %arg6[%c0_12, %c0_13] : memref<32x1xf32, #tpu.memory_space<vmem>>, vector<32x1xf32>
    %16 = vector.broadcast %15 : vector<32x1xf32> to vector<32x128xf32>
    %17 = arith.mulf %14, %16 : vector<32x128xf32>
    %cst_14 = arith.constant dense<0.000000e+00> : vector<128xf32>
    %18 = vector.multi_reduction <add>, %17, %cst_14 [0] : vector<32x128xf32> to vector<128xf32>
    %19 = vector.shape_cast %18 : vector<128xf32> to vector<1x128xf32>
    %c0_15 = arith.constant 0 : index
    %20 = memref.load %arg7[%c0_15] : memref<1xf32, #tpu.memory_space<smem>>
    %21 = vector.broadcast %20 : f32 to vector<1x128xf32>
    %22 = arith.addf %19, %21 : vector<1x128xf32>
    %c0_16 = arith.constant 0 : index
    %c0_17 = arith.constant 0 : index
    %23 = vector.load %arg8[%c0_16, %c0_17] : memref<1x128xf32, #tpu.memory_space<vmem>>, vector<1x128xf32>
    tpu.vector_store %arg8[%c0_16, %c0_17], %22 {strides = array<i32>} : memref<1x128xf32, #tpu.memory_space<vmem>>, vector<1x128xf32>,
    return
  }
  func.func @transform_0(%arg0: i32) -> (i32, i32) {
    %c0_i32 = arith.constant 0 : i32
    %c0_i32_0 = arith.constant 0 : i32
    return %arg0, %c0_i32 : i32, i32
  }
  func.func @transform_1(%arg0: i32) -> (i32, i32) {
    %c0_i32 = arith.constant 0 : i32
    %c0_i32_0 = arith.constant 0 : i32
    %c0_i32_1 = arith.constant 0 : i32
    return %c0_i32, %c0_i32_0 : i32, i32
  }
  func.func @transform_2(%arg0: i32) -> (i32, i32) {
    %c0_i32 = arith.constant 0 : i32
    %c0_i32_0 = arith.constant 0 : i32
    %c0_i32_1 = arith.constant 0 : i32
    return %c0_i32, %c0_i32_0 : i32, i32
  }
  func.func @transform_3(%arg0: i32) -> (i32, i32) {
    %c0_i32 = arith.constant 0 : i32
    %c0_i32_0 = arith.constant 0 : i32
    %c0_i32_1 = arith.constant 0 : i32
    return %c0_i32, %c0_i32_0 : i32, i32
  }
  func.func @transform_4(%arg0: i32) -> (i32, i32) {
    %c0_i32 = arith.constant 0 : i32
    %c0_i32_0 = arith.constant 0 : i32
    %c0_i32_1 = arith.constant 0 : i32
    return %c0_i32, %c0_i32_0 : i32, i32
  }
  func.func @transform_5(%arg0: i32) -> (i32, i32) {
    %c0_i32 = arith.constant 0 : i32
    %c0_i32_0 = arith.constant 0 : i32
    %c0_i32_1 = arith.constant 0 : i32
    return %c0_i32, %c0_i32_0 : i32, i32
  }
  func.func @transform_6(%arg0: i32) -> i32 {
    %c0_i32 = arith.constant 0 : i32
    %c0_i32_0 = arith.constant 0 : i32
    return %c0_i32 : i32
  }
  func.func @transform_7(%arg0: i32) -> (i32, i32) {
    %c0_i32 = arith.constant 0 : i32
    %c0_i32_0 = arith.constant 0 : i32
    return %c0_i32, %arg0 : i32, i32
  }
}

</mosaic_0001>

<llo_original>
// kernel: pre_nn_function_forward.1
$region0: #{pre_nn_function_forward.1}
  #allocation0 [shape = 'u32[]', space=smem, size = 0x4, offset = 0x4, fixed_abs, tag = 'smem constant byte address 0x4 - core index']
  #allocation1 [shape = 'u32[72,128]{1,0:T(1,128)}', space=vmem, size = 0x9000, scoped, tag = 'internal scratch']
  #allocation2 [shape = 'f32[1]{0:T(128)S(6)}', space=smem, size = 0x200, scoped, tag = 'scoped memory for pre_nn_function_forward.1']
  %s0 = inlined_call_operand.vmem [shape: f32[128,16], index: 0, kind: input, shape index: {}]
  %s1 = inlined_call_operand.vmem [shape: f32[32,16], index: 1, kind: input, shape index: {}]
  %s2 = inlined_call_operand.vmem [shape: f32[32,1], index: 2, kind: input, shape index: {}]
  %s3 = inlined_call_operand.vmem [shape: f32[32,32], index: 3, kind: input, shape index: {}]
  %s4 = inlined_call_operand.vmem [shape: f32[32,1], index: 4, kind: input, shape index: {}]
  %s5 = inlined_call_operand.vmem [shape: f32[32,1], index: 5, kind: input, shape index: {}]
  %s6 = inlined_call_operand.<no memory space> [shape: f32[1], index: 6, kind: input, shape index: {}]
  %s7 = inlined_call_operand.hbm [shape: f32[1,128], index: 7, kind: output, shape index: {}]
  %s8 = sld [smem:[#allocation0]]
  $region38: #{pre_nn_function_forward.1} parent=0
    _
  %s10 = ssub.s32 1, %s8
  %s11 = scalar_select 0, %s10, %s8
  %12 = sst [smem:[#allocation2]] %s6
  $region1: #{pre_nn_function_forward.1} parent=0
    #allocation3 [shape = 'u8[512]{0}', space=vmem, size = 0x400, scoped, tag = 'output window, operand 0, single buffered']
    #allocation4 [shape = 's32[1]{0}', space=sflag, size = 0x4, scoped, tag = 'scoped memory for pre_nn_function_forward.1']
    %13 = vsyncpa [#allocation4], 0
    // Predicated region
    $region2: #{pre_nn_function_forward.1} parent=1 // pred_check
      _
    $region3: #{pre_nn_function_forward.1} parent=1 // pred_check_branch
      %15 = sbr.rel (0) target = $region5
    $region4: #{pre_nn_function_forward.1} parent=1 // pred_region
      _
    $region5: #{pre_nn_function_forward.1} parent=1 // pred_fallthru
      _
    // Predicated region
    $region6: #{pre_nn_function_forward.1} parent=1 // pred_check
      _
    $region7: #{pre_nn_function_forward.1} parent=1 // pred_check_branch
      %17 = sbr.rel (0) target = $region9
    $region8: #{pre_nn_function_forward.1} parent=1 // pred_region
      _
    $region9: #{pre_nn_function_forward.1} parent=1 // pred_fallthru
      _
    // Predicated region
    $region10: #{pre_nn_function_forward.1} parent=1 // pred_check
      _
    $region11: #{pre_nn_function_forward.1} parent=1 // pred_check_branch
      %19 = sbr.rel (0) target = $region13
    $region12: #{pre_nn_function_forward.1} parent=1 // pred_region
      _
    $region13: #{pre_nn_function_forward.1} parent=1 // pred_fallthru
      _
    // Predicated region
    $region14: #{pre_nn_function_forward.1} parent=1 // pred_check
      _
    $region15: #{pre_nn_function_forward.1} parent=1 // pred_check_branch
      %21 = sbr.rel (0) target = $region17
    $region16: #{pre_nn_function_forward.1} parent=1 // pred_region
      _
    $region17: #{pre_nn_function_forward.1} parent=1 // pred_fallthru
      _
    // Predicated region
    $region18: #{pre_nn_function_forward.1} parent=1 // pred_check
      _
    $region19: #{pre_nn_function_forward.1} parent=1 // pred_check_branch
      %23 = sbr.rel (0) target = $region21
    $region20: #{pre_nn_function_forward.1} parent=1 // pred_region
      _
    $region21: #{pre_nn_function_forward.1} parent=1 // pred_fallthru
      _
    // Predicated region
    $region22: #{pre_nn_function_forward.1} parent=1 // pred_check
      _
    $region23: #{pre_nn_function_forward.1} parent=1 // pred_check_branch
      %25 = sbr.rel (0) target = $region25
    $region24: #{pre_nn_function_forward.1} parent=1 // pred_region
      _
    $region25: #{pre_nn_function_forward.1} parent=1 // pred_fallthru
      _
    // Predicated region
    $region26: #{pre_nn_function_forward.1} parent=1 // pred_check
      _
    $region27: #{pre_nn_function_forward.1} parent=1 // pred_check_branch
      %27 = sbr.rel (0) target = $region29
    $region28: #{pre_nn_function_forward.1} parent=1 // pred_region
      _
    $region29: #{pre_nn_function_forward.1} parent=1 // pred_fallthru
      _
    %v28 = vld [vmem:[%s1] sm:$0xff]
    %v29 = vld [vmem:[%s1 + $0x8] sm:$0xff]
    %v30 = vld [vmem:[%s1 + $0x10] sm:$0xff]
    %v31 = vld [vmem:[%s1 + $0x18] sm:$0xff]
    %v32 = vld [vmem:[%s0] sm:$0xff]
    %v33 = vld [vmem:[%s0 + $0x8] sm:$0xff]
    %v34 = vld [vmem:[%s0 + $0x10] sm:$0xff]
    %v35 = vld [vmem:[%s0 + $0x18] sm:$0xff]
    %v36 = vld [vmem:[%s0 + $0x20] sm:$0xff]
    %v37 = vld [vmem:[%s0 + $0x28] sm:$0xff]
    %v38 = vld [vmem:[%s0 + $0x30] sm:$0xff]
    %v39 = vld [vmem:[%s0 + $0x38] sm:$0xff]
    %v40 = vld [vmem:[%s0 + $0x40] sm:$0xff]
    %v41 = vld [vmem:[%s0 + $0x48] sm:$0xff]
    %v42 = vld [vmem:[%s0 + $0x50] sm:$0xff]
    %v43 = vld [vmem:[%s0 + $0x58] sm:$0xff]
    %v44 = vld [vmem:[%s0 + $0x60] sm:$0xff]
    %v45 = vld [vmem:[%s0 + $0x68] sm:$0xff]
    %v46 = vld [vmem:[%s0 + $0x70] sm:$0xff]
    %v47 = vld [vmem:[%s0 + $0x78] sm:$0xff]
    %v48 = vld [vmem:[%s2] sm:$0xff]
    %v49 = vld [vmem:[%s2 + $0x8] sm:$0xff]
    %v50 = vld [vmem:[%s2 + $0x10] sm:$0xff]
    %v51 = vld [vmem:[%s2 + $0x18] sm:$0xff]
    %53 = vset.pattern.permute.xlu0 0
    %54 = vperm.xlu0 %53, %v48
    %v55 = vpop.permute.xlu0 %54
    %58 = vset.pattern.permute.xlu0 0
    %59 = vperm.xlu0 %58, %v49
    %v60 = vpop.permute.xlu0 %59
    %63 = vset.pattern.permute.xlu0 0
    %64 = vperm.xlu0 %63, %v50
    %v65 = vpop.permute.xlu0 %64
    %68 = vset.pattern.permute.xlu0 0
    %69 = vperm.xlu0 %68, %v51
    %v70 = vpop.permute.xlu0 %69
    %vm72 = vcmask 130048
    %v74 = vsel %vm72, %v28, 0
    %v77 = vsel %vm72, %v29, 0
    %v80 = vsel %vm72, %v30, 0
    %v83 = vsel %vm72, %v31, 0
    %v86 = vsel %vm72, %v32, 0
    %v89 = vsel %vm72, %v33, 0
    %v92 = vsel %vm72, %v34, 0
    %v95 = vsel %vm72, %v35, 0
    %v98 = vsel %vm72, %v36, 0
    %v101 = vsel %vm72, %v37, 0
    %v104 = vsel %vm72, %v38, 0
    %v107 = vsel %vm72, %v39, 0
    %v110 = vsel %vm72, %v40, 0
    %v113 = vsel %vm72, %v41, 0
    %v116 = vsel %vm72, %v42, 0
    %v119 = vsel %vm72, %v43, 0
    %v122 = vsel %vm72, %v44, 0
    %v125 = vsel %vm72, %v45, 0
    %v128 = vsel %vm72, %v46, 0
    %v131 = vsel %vm72, %v47, 0
    %133 = vmatpush.xpose.msra.mxu0 %v131
    %134 = vmatpush.xpose.msra.mxu0 %v128
    %135 = vmatpush.xpose.msra.mxu0 %v125
    %136 = vmatpush.xpose.msra.mxu0 %v122
    %137 = vmatpush.xpose.msra.mxu0 %v119
    %138 = vmatpush.xpose.msra.mxu0 %v116
    %139 = vmatpush.xpose.msra.mxu0 %v113
    %140 = vmatpush.xpose.msra.mxu0 %v110
    %141 = vmatpush.xpose.msra.mxu0 %v107
    %142 = vmatpush.xpose.msra.mxu0 %v104
    %143 = vmatpush.xpose.msra.mxu0 %v101
    %144 = vmatpush.xpose.msra.mxu0 %v98
    %145 = vmatpush.xpose.msra.mxu0 %v95
    %146 = vmatpush.xpose.msra.mxu0 %v92
    %147 = vmatpush.xpose.msra.mxu0 %v89
    %148 = vmatpush.xpose.msra.mxu0 %v86
    %149 = vmatmul.f32.gmra.mxu0 %v74
    %v150 = vpop.f32.mrf.mxu0
    %v151 = vadd.f32 %v55, %v150
    %152 = vmatmul.f32.gmra.mxu0 %v77
    %v153 = vpop.f32.mrf.mxu0
    %v154 = vadd.f32 %v60, %v153
    %155 = vmatmul.f32.gmra.mxu0 %v80
    %v156 = vpop.f32.mrf.mxu0
    %v157 = vadd.f32 %v65, %v156
    %158 = vmatmul.f32.gmra.mxu0 %v83
    %v159 = vpop.f32.mrf.mxu0
    %v160 = vadd.f32 %v70, %v159
    %161 = vdwg.mxu0
    %v162 = vmax.f32 %v151, 0.0
    %v163 = vmax.f32 %v154, 0.0
    %v164 = vmax.f32 %v157, 0.0
    %v165 = vmax.f32 %v160, 0.0
    %v166 = vld [vmem:[%s3] sm:$0xff]
    %v167 = vld [vmem:[%s3 + $0x8] sm:$0xff]
    %v168 = vld [vmem:[%s3 + $0x10] sm:$0xff]
    %v169 = vld [vmem:[%s3 + $0x18] sm:$0xff]
    %v170 = vld [vmem:[%s4] sm:$0xff]
    %v171 = vld [vmem:[%s4 + $0x8] sm:$0xff]
    %v172 = vld [vmem:[%s4 + $0x10] sm:$0xff]
    %v173 = vld [vmem:[%s4 + $0x18] sm:$0xff]
    %175 = vset.pattern.permute.xlu0 0
    %176 = vperm.xlu0 %175, %v170
    %v177 = vpop.permute.xlu0 %176
    %180 = vset.pattern.permute.xlu0 0
    %181 = vperm.xlu0 %180, %v171
    %v182 = vpop.permute.xlu0 %181
    %185 = vset.pattern.permute.xlu0 0
    %186 = vperm.xlu0 %185, %v172
    %v187 = vpop.permute.xlu0 %186
    %190 = vset.pattern.permute.xlu0 0
    %191 = vperm.xlu0 %190, %v173
    %v192 = vpop.permute.xlu0 %191
    %vm194 = vcmask 261120
    %v196 = vsel %vm194, %v166, 0
    %v199 = vsel %vm194, %v167, 0
    %v202 = vsel %vm194, %v168, 0
    %v205 = vsel %vm194, %v169, 0
    %207 = vmatpush.msra.mxu0 0.0
    %208 = vmatpush.msra.mxu0 0.0
    %209 = vmatpush.msra.mxu0 0.0
    %210 = vmatpush.msra.mxu0 0.0
    %211 = vmatpush.msra.mxu0 0.0
    %212 = vmatpush.msra.mxu0 0.0
    %213 = vmatpush.msra.mxu0 0.0
    %214 = vmatpush.msra.mxu0 0.0
    %215 = vmatpush.msra.mxu0 0.0
    %216 = vmatpush.msra.mxu0 0.0
    %217 = vmatpush.msra.mxu0 0.0
    %218 = vmatpush.msra.mxu0 0.0
    %219 = vmatpush.msra.mxu0 %v165
    %220 = vmatpush.msra.mxu0 %v164
    %221 = vmatpush.msra.mxu0 %v163
    %222 = vmatpush.msra.mxu0 %v162
    %223 = vmatmul.f32.gmra.mxu0 %v196
    %v224 = vpop.f32.mrf.mxu0
    %v225 = vadd.f32 %v177, %v224
    %226 = vmatmul.f32.gmra.mxu0 %v199
    %v227 = vpop.f32.mrf.mxu0
    %v228 = vadd.f32 %v182, %v227
    %229 = vmatmul.f32.gmra.mxu0 %v202
    %v230 = vpop.f32.mrf.mxu0
    %v231 = vadd.f32 %v187, %v230
    %232 = vmatmul.f32.gmra.mxu0 %v205
    %v233 = vpop.f32.mrf.mxu0
    %v234 = vadd.f32 %v192, %v233
    %235 = vdwg.mxu0
    %v236 = vmax.f32 %v225, 0.0
    %v237 = vmax.f32 %v228, 0.0
    %v238 = vmax.f32 %v231, 0.0
    %v239 = vmax.f32 %v234, 0.0
    %v240 = vld [vmem:[%s5] sm:$0xff]
    %v241 = vld [vmem:[%s5 + $0x8] sm:$0xff]
    %v242 = vld [vmem:[%s5 + $0x10] sm:$0xff]
    %v243 = vld [vmem:[%s5 + $0x18] sm:$0xff]
    %245 = vset.pattern.permute.xlu0 0
    %246 = vperm.xlu0 %245, %v240
    %v247 = vpop.permute.xlu0 %246
    %250 = vset.pattern.permute.xlu0 0
    %251 = vperm.xlu0 %250, %v241
    %v252 = vpop.permute.xlu0 %251
    %255 = vset.pattern.permute.xlu0 0
    %256 = vperm.xlu0 %255, %v242
    %v257 = vpop.permute.xlu0 %256
    %260 = vset.pattern.permute.xlu0 0
    %261 = vperm.xlu0 %260, %v243
    %v262 = vpop.permute.xlu0 %261
    %v264 = vmul.f32 %v236, %v247
    %v265 = vmul.f32 %v237, %v252
    %v266 = vmul.f32 %v238, %v257
    %v267 = vmul.f32 %v239, %v262
    %v268 = vadd.f32 %v264, %v265
    %v269 = vadd.f32 %v268, %v266
    %v270 = vadd.f32 %v269, %v267
    %v271 = vrot.slane %v270, 4
    %v272 = vadd.f32 %v270, %v271
    %v273 = vrot.slane %v272, 2
    %v274 = vadd.f32 %v272, %v273
    %v275 = vrot.slane %v274, 1
    %v276 = vadd.f32 %v274, %v275
    %s277 = sld [smem:[#allocation2]]
    %v278 = vstv %s277
    %v279 = vadd.f32 %v276, %v278
    %280 = vst [vmem:[#allocation3] sm:$0x1] %v279
    // Predicated region
    $region30: #{pre_nn_function_forward.1} parent=1 // pred_check
      _
    $region31: #{pre_nn_function_forward.1} parent=1 // pred_check_branch
      %282 = sbr.rel (0) target = $region33
    $region32: #{pre_nn_function_forward.1} parent=1 // pred_region
      %284 = vsyncadd [#allocation4], 0
      %s286 = sshll.u32 [#allocation3], 4
      %s287 = int_to_ptr.vmem [resolvable:$true] %s286
      %s288 = sshll.u32 %s7, 4
      %s289 = int_to_ptr.hbm [resolvable:$true] %s288
      %291 = dma.vmem_to_hbm [thread:$0]  %s287, 16, %s289, [#allocation4]
    $region33: #{pre_nn_function_forward.1} parent=1 // pred_fallthru
      _
    // Predicated region
    $region34: #{pre_nn_function_forward.1} parent=1 // pred_check
      _
    $region35: #{pre_nn_function_forward.1} parent=1 // pred_check_branch
      %293 = sbr.rel (0) target = $region37
    $region36: #{pre_nn_function_forward.1} parent=1 // pred_region
      %295 = dma.done [#allocation4], 16
    $region37: #{pre_nn_function_forward.1} parent=1 // pred_fallthru
      _
    %296 = vsyncpa [#allocation4], 1

</llo_original>
